<compile_context>
chip_gen: v6e
topology: v6e:2x2x1
jax: 0.10.0
libtpu: 0.0.40
codegen_flags: <defaults>
</compile_context>

<pallas_src>
import functools

import jax
import jax.numpy as jnp
from jax.experimental import pallas as pl
from jax.experimental.pallas import tpu as pltpu


def _tversky_partials_kernel(x_ref, lbl_ref, tp_ref, sp_ref, sg_ref, *,
                             num_classes, s_tile, hw, inner_tiles, total_tiles,
                             needs_mask):
    p_idx = pl.program_id(1)
    j = pl.program_id(2)

    @pl.when(j == 0)
    def _():
        tp_ref[...] = jnp.zeros_like(tp_ref)
        sp_ref[...] = jnp.zeros_like(sp_ref)
        sg_ref[...] = jnp.zeros_like(sg_ref)

    lbl = lbl_ref[...].astype(jnp.int32)                  # (s_tile, 128)

    def accumulate(valid):
        # Per-class dense planes, upcast in VMEM (inputs stay native dtype).
        planes = [x_ref[c].astype(jnp.float32) for c in range(num_classes)]
        if valid is not None:
            planes = [jnp.where(valid, pc, 0.0) for pc in planes]

        # Softmax over the class axis = C-1 elementwise max/adds over planes.
        m = planes[0]
        for c in range(1, num_classes):
            m = jnp.maximum(m, planes[c])
        es = [jnp.exp(pc - m) for pc in planes]
        denom = es[0]
        for c in range(1, num_classes):
            denom = denom + es[c]
        inv = 1.0 / denom                                 # exact reciprocal

        vf = valid.astype(jnp.float32) if valid is not None else None
        for c in range(num_classes):
            prob = es[c] * inv                            # (s_tile, 128)
            g = (lbl == c).astype(jnp.float32)            # one-hot plane c
            if vf is not None:
                g = g * vf
                prob_sum = prob * vf
            else:
                prob_sum = prob
            # Lane-vector partials, accumulated in the resident output block.
            tp_ref[c:c + 1, :] += jnp.sum(prob * g, axis=0, keepdims=True)
            sp_ref[c:c + 1, :] += jnp.sum(prob_sum, axis=0, keepdims=True)
            sg_ref[c:c + 1, :] += jnp.sum(g, axis=0, keepdims=True)

    if needs_mask:
        # Only the globally-last spatial tile contains padded / out-of-bounds
        # elements; all other tiles run the cheap unmasked path.
        flat_tile = p_idx * inner_tiles + j
        is_last = flat_tile == (total_tiles - 1)

        @pl.when(is_last)
        def _():
            row = jax.lax.broadcasted_iota(jnp.int32, (s_tile, 128), 0)
            lane = jax.lax.broadcasted_iota(jnp.int32, (s_tile, 128), 1)
            base = flat_tile * (s_tile * 128)
            accumulate((base + row * 128 + lane) < hw)

        @pl.when(jnp.logical_not(is_last))
        def _():
            accumulate(None)
    else:
        accumulate(None)


def _pick_s_tile(s_rows, num_classes, logit_bytes, lbl_bytes):
    # VMEM per row of 128 lanes:
    #   double-buffered input blocks : 2 * 128 * (C*logit_bytes + lbl_bytes)
    #   ~4 live (C, s_tile, 128) f32 temporaries (x, exp, prob, one-hot)
    per_row = 2 * 128 * (num_classes * logit_bytes + lbl_bytes)
    per_row += 4 * 128 * num_classes * 4
    budget = 28 * 1024 * 1024          # conservative: fits v7x's 64 MiB / TC
    s_tile = min(512, max(8, budget // per_row))
    if s_rows <= s_tile:
        return s_rows                  # whole axis; block == full dim is legal
    return (s_tile // 8) * 8           # keep the sublane dim a multiple of 8


def tversky_loss(y_pred, y_true, classes, alpha=0.7, beta=0.3, eps=1e-5):
    """y_pred: (N, C, H, W) float logits.  y_true: (N, H, W) integer labels."""
    N, C, H, W = y_pred.shape
    assert C == classes
    hw = H * W

    if not jnp.issubdtype(y_true.dtype, jnp.integer):
        y_true = y_true.astype(jnp.int32)

    # Native-layout, native-dtype views (contiguous reshapes; no casts).
    hw_pad = ((hw + 127) // 128) * 128
    x = y_pred.reshape(N, C, hw)
    lbl = y_true.reshape(N, hw)
    if hw_pad != hw:
        # TODO(synk): rare path (H*W not a multiple of 128) pays one pad copy.
        x = jnp.pad(x, ((0, 0), (0, 0), (0, hw_pad - hw)))
        lbl = jnp.pad(lbl, ((0, 0), (0, hw_pad - hw)))
    s_rows = hw_pad // 128
    x = x.reshape(N, C, s_rows, 128)
    lbl = lbl.reshape(N, s_rows, 128)

    s_tile = _pick_s_tile(s_rows, C, x.dtype.itemsize, lbl.dtype.itemsize)
    total_tiles = pl.cdiv(s_rows, s_tile)
    num_par = 2 if (total_tiles % 2 == 0) else 1     # spatial split for 2 TCs
    inner_tiles = total_tiles // num_par
    needs_mask = (hw % (s_tile * 128)) != 0

    kernel = functools.partial(
        _tversky_partials_kernel, num_classes=C, s_tile=s_tile, hw=hw,
        inner_tiles=inner_tiles, total_tiles=total_tiles, needs_mask=needs_mask)

    out_sd = jax.ShapeDtypeStruct((N, num_par, C, 128), jnp.float32)
    out_spec = pl.BlockSpec((pl.Squeezed(), pl.Squeezed(), C, 128),
                            lambda n, p, j: (n, p, 0, 0))

    cost = pl.CostEstimate(
        flops=int(12 * C * N * hw_pad),
        transcendentals=int(C * N * hw_pad),
        bytes_accessed=int(N * C * hw_pad * x.dtype.itemsize
                           + N * hw_pad * lbl.dtype.itemsize
                           + 3 * N * num_par * C * 128 * 4),
    )

    tp_p, sp_p, sg_p = pl.pallas_call(
        kernel,
        out_shape=(out_sd, out_sd, out_sd),
        grid_spec=pltpu.PrefetchScalarGridSpec(
            num_scalar_prefetch=0,
            grid=(N, num_par, inner_tiles),
            in_specs=[
                pl.BlockSpec((pl.Squeezed(), C, s_tile, 128),
                             lambda n, p, j, J=inner_tiles: (n, 0, p * J + j, 0)),
                pl.BlockSpec((pl.Squeezed(), s_tile, 128),
                             lambda n, p, j, J=inner_tiles: (n, p * J + j, 0)),
            ],
            out_specs=(out_spec, out_spec, out_spec),
        ),
        compiler_params=pltpu.CompilerParams(
            dimension_semantics=("parallel", "parallel", "arbitrary"),
            vmem_limit_bytes=40 * 1024 * 1024),
        cost_estimate=cost,
    )(x, lbl)

    # Tiny epilogue in plain JAX: combine per-(batch, chunk) lane partials and
    # apply the Tversky formula (class 0 excluded, matching the PyTorch loop).
    tp = jnp.sum(tp_p, axis=(0, 1, 3))               # (C,)
    sp = jnp.sum(sp_p, axis=(0, 1, 3))
    sg = jnp.sum(sg_p, axis=(0, 1, 3))
    # fp = alpha * sum(p0*(1-g0)) = alpha*(sum_p - tp)
    # fn = beta  * sum((1-p0)*g0) = beta *(sum_g - tp)
    den = tp + alpha * (sp - tp) + beta * (sg - tp) + eps
    result = tp / den
    loss = jnp.sum(result[1:])
    return 1.0 - loss / classes


def tversky_loss_ref(y_pred, y_true, classes, alpha=0.7, beta=0.3, eps=1e-5):
    p = jax.nn.softmax(y_pred, axis=1)
    g = jax.nn.one_hot(y_true.astype(jnp.int32), classes, axis=1,
                       dtype=jnp.float32)
    loss = 0.0
    for i in range(1, classes):
        p0 = p[:, i]
        g0 = g[:, i]
        tp = jnp.sum(p0 * g0)
        fp = alpha * jnp.sum(p0 * (1.0 - g0))
        fn = beta * jnp.sum((1.0 - p0) * g0)
        loss += tp / (tp + fp + fn + eps)
    return 1.0 - loss / classes


if __name__ == "__main__":
    key = jax.random.PRNGKey(0)
    k1, k2 = jax.random.split(key)

    N, C, H, W = 2, 4, 16, 16
    y_pred = jax.random.normal(k1, (N, C, H, W), dtype=jnp.float32)
    y_true = jax.random.randint(k2, (N, H, W), 0, C, dtype=jnp.int32)

    out = tversky_loss(y_pred, y_true, classes=C)
    out = jax.block_until_ready(out)

    ref = tversky_loss_ref(y_pred, y_true, classes=C)
    assert jnp.allclose(out, ref, atol=1e-5, rtol=1e-5), (out, ref)

    print("KERNEL_OK")
</pallas_src>

<mosaic_0001>
module attributes {stable_mosaic.version = 11 : i64} {
  func.func @_tversky_partials_kernel(%arg0: i32, %arg1: i32, %arg2: i32, %arg3: memref<1x4x2x128xf32, #tpu.memory_space<vmem>>, %arg4: memref<1x2x128xi32, #tpu.memory_space<vmem>>, %arg5: memref<1x1x4x128xf32, #tpu.memory_space<vmem>>, %arg6: memref<1x1x4x128xf32, #tpu.memory_space<vmem>>, %arg7: memref<1x1x4x128xf32, #tpu.memory_space<vmem>>) attributes {dimension_semantics = [#tpu.dimension_semantics<parallel>, #tpu.dimension_semantics<parallel>, #tpu.dimension_semantics<arbitrary>], iteration_bounds = array<i64: 2, 1, 1>, scalar_prefetch = 0 : i64, scratch_operands = 0 : i64, tpu.core_type = #tpu.core_type<tc>, window_params = [{transform_indices = @transform_0, window_bounds = array<i64: 1, 4, 2, 128>}, {transform_indices = @transform_1, window_bounds = array<i64: 1, 2, 128>}, {transform_indices = @transform_2, window_bounds = array<i64: 1, 1, 4, 128>}, {transform_indices = @transform_3, window_bounds = array<i64: 1, 1, 4, 128>}, {transform_indices = @transform_4, window_bounds = array<i64: 1, 1, 4, 128>}]} {
    %c0_i32 = arith.constant 0 : i32
    %0 = arith.cmpi eq, %arg2, %c0_i32 : i32
    %1 = arith.extui %0 : i1 to i32
    %c0_i32_0 = arith.constant 0 : i32
    %2 = arith.cmpi ne, %1, %c0_i32_0 : i32
    scf.if %2 {
      %cst_125 = arith.constant 0.000000e+00 : f32
      %149 = vector.broadcast %cst_125 : f32 to vector<4x128xf32>
      %c0_126 = arith.constant 0 : index
      %c0_127 = arith.constant 0 : index
      %c0_128 = arith.constant 0 : index
      %c0_129 = arith.constant 0 : index
      %150 = vector.load %arg5[%c0_126, %c0_127, %c0_128, %c0_129] : memref<1x1x4x128xf32, #tpu.memory_space<vmem>>, vector<1x1x4x128xf32>
      %151 = vector.shape_cast %150 : vector<1x1x4x128xf32> to vector<4x128xf32>
      %152 = vector.shape_cast %149 : vector<4x128xf32> to vector<1x1x4x128xf32>
      tpu.vector_store %arg5[%c0_126, %c0_127, %c0_128, %c0_129], %152 {strides = array<i32>} : memref<1x1x4x128xf32, #tpu.memory_space<vmem>>, vector<1x1x4x128xf32>,
      %cst_130 = arith.constant 0.000000e+00 : f32
      %153 = vector.broadcast %cst_130 : f32 to vector<4x128xf32>
      %c0_131 = arith.constant 0 : index
      %c0_132 = arith.constant 0 : index
      %c0_133 = arith.constant 0 : index
      %c0_134 = arith.constant 0 : index
      %154 = vector.load %arg6[%c0_131, %c0_132, %c0_133, %c0_134] : memref<1x1x4x128xf32, #tpu.memory_space<vmem>>, vector<1x1x4x128xf32>
      %155 = vector.shape_cast %154 : vector<1x1x4x128xf32> to vector<4x128xf32>
      %156 = vector.shape_cast %153 : vector<4x128xf32> to vector<1x1x4x128xf32>
      tpu.vector_store %arg6[%c0_131, %c0_132, %c0_133, %c0_134], %156 {strides = array<i32>} : memref<1x1x4x128xf32, #tpu.memory_space<vmem>>, vector<1x1x4x128xf32>,
      %cst_135 = arith.constant 0.000000e+00 : f32
      %157 = vector.broadcast %cst_135 : f32 to vector<4x128xf32>
      %c0_136 = arith.constant 0 : index
      %c0_137 = arith.constant 0 : index
      %c0_138 = arith.constant 0 : index
      %c0_139 = arith.constant 0 : index
      %158 = vector.load %arg7[%c0_136, %c0_137, %c0_138, %c0_139] : memref<1x1x4x128xf32, #tpu.memory_space<vmem>>, vector<1x1x4x128xf32>
      %159 = vector.shape_cast %158 : vector<1x1x4x128xf32> to vector<4x128xf32>
      %160 = vector.shape_cast %157 : vector<4x128xf32> to vector<1x1x4x128xf32>
      tpu.vector_store %arg7[%c0_136, %c0_137, %c0_138, %c0_139], %160 {strides = array<i32>} : memref<1x1x4x128xf32, #tpu.memory_space<vmem>>, vector<1x1x4x128xf32>,
    } else {
    }
    %c0 = arith.constant 0 : index
    %c0_1 = arith.constant 0 : index
    %c0_2 = arith.constant 0 : index
    %3 = vector.load %arg4[%c0, %c0_1, %c0_2] : memref<1x2x128xi32, #tpu.memory_space<vmem>>, vector<1x2x128xi32>
    %4 = vector.shape_cast %3 : vector<1x2x128xi32> to vector<2x128xi32>
    %c0_3 = arith.constant 0 : index
    %c0_4 = arith.constant 0 : index
    %c0_5 = arith.constant 0 : index
    %c0_6 = arith.constant 0 : index
    %5 = vector.load %arg3[%c0_3, %c0_4, %c0_5, %c0_6] : memref<1x4x2x128xf32, #tpu.memory_space<vmem>>, vector<1x1x2x128xf32>
    %6 = vector.shape_cast %5 : vector<1x1x2x128xf32> to vector<2x128xf32>
    %c0_7 = arith.constant 0 : index
    %c1 = arith.constant 1 : index
    %c0_8 = arith.constant 0 : index
    %c0_9 = arith.constant 0 : index
    %7 = vector.load %arg3[%c0_7, %c1, %c0_8, %c0_9] : memref<1x4x2x128xf32, #tpu.memory_space<vmem>>, vector<1x1x2x128xf32>
    %8 = vector.shape_cast %7 : vector<1x1x2x128xf32> to vector<2x128xf32>
    %c0_10 = arith.constant 0 : index
    %c2 = arith.constant 2 : index
    %c0_11 = arith.constant 0 : index
    %c0_12 = arith.constant 0 : index
    %9 = vector.load %arg3[%c0_10, %c2, %c0_11, %c0_12] : memref<1x4x2x128xf32, #tpu.memory_space<vmem>>, vector<1x1x2x128xf32>
    %10 = vector.shape_cast %9 : vector<1x1x2x128xf32> to vector<2x128xf32>
    %c0_13 = arith.constant 0 : index
    %c3 = arith.constant 3 : index
    %c0_14 = arith.constant 0 : index
    %c0_15 = arith.constant 0 : index
    %11 = vector.load %arg3[%c0_13, %c3, %c0_14, %c0_15] : memref<1x4x2x128xf32, #tpu.memory_space<vmem>>, vector<1x1x2x128xf32>
    %12 = vector.shape_cast %11 : vector<1x1x2x128xf32> to vector<2x128xf32>
    %13 = arith.maximumf %6, %8 : vector<2x128xf32>
    %14 = arith.maximumf %13, %10 : vector<2x128xf32>
    %15 = arith.maximumf %14, %12 : vector<2x128xf32>
    %16 = arith.subf %6, %15 : vector<2x128xf32>
    %17 = math.exp %16 : vector<2x128xf32>
    %18 = arith.subf %8, %15 : vector<2x128xf32>
    %19 = math.exp %18 : vector<2x128xf32>
    %20 = arith.subf %10, %15 : vector<2x128xf32>
    %21 = math.exp %20 : vector<2x128xf32>
    %22 = arith.subf %12, %15 : vector<2x128xf32>
    %23 = math.exp %22 : vector<2x128xf32>
    %24 = arith.addf %17, %19 : vector<2x128xf32>
    %25 = arith.addf %24, %21 : vector<2x128xf32>
    %26 = arith.addf %25, %23 : vector<2x128xf32>
    %cst = arith.constant 1.000000e+00 : f32
    %27 = vector.broadcast %cst : f32 to vector<2x128xf32>
    %28 = arith.divf %27, %26 : vector<2x128xf32>
    %29 = arith.mulf %17, %28 : vector<2x128xf32>
    %c0_i32_16 = arith.constant 0 : i32
    %30 = vector.broadcast %c0_i32_16 : i32 to vector<2x128xi32>
    %31 = arith.cmpi eq, %4, %30 : vector<2x128xi32>
    %32 = arith.extui %31 : vector<2x128xi1> to vector<2x128xi32>
    %33 = arith.sitofp %32 : vector<2x128xi32> to vector<2x128xf32>
    %c0_17 = arith.constant 0 : index
    %c0_18 = arith.constant 0 : index
    %c0_19 = arith.constant 0 : index
    %c0_20 = arith.constant 0 : index
    %34 = vector.load %arg5[%c0_17, %c0_18, %c0_19, %c0_20] : memref<1x1x4x128xf32, #tpu.memory_space<vmem>>, vector<1x1x1x128xf32>
    %35 = vector.shape_cast %34 : vector<1x1x1x128xf32> to vector<1x128xf32>
    %36 = arith.mulf %29, %33 : vector<2x128xf32>
    %cst_21 = arith.constant dense<0.000000e+00> : vector<128xf32>
    %37 = vector.multi_reduction <add>, %36, %cst_21 [0] : vector<2x128xf32> to vector<128xf32>
    %38 = vector.shape_cast %37 : vector<128xf32> to vector<1x128xf32>
    %39 = arith.addf %35, %38 : vector<1x128xf32>
    %c0_22 = arith.constant 0 : index
    %c0_23 = arith.constant 0 : index
    %c0_24 = arith.constant 0 : index
    %c0_25 = arith.constant 0 : index
    %40 = vector.load %arg5[%c0_22, %c0_23, %c0_24, %c0_25] : memref<1x1x4x128xf32, #tpu.memory_space<vmem>>, vector<1x1x1x128xf32>
    %41 = vector.shape_cast %40 : vector<1x1x1x128xf32> to vector<1x128xf32>
    %42 = vector.shape_cast %39 : vector<1x128xf32> to vector<1x1x1x128xf32>
    tpu.vector_store %arg5[%c0_22, %c0_23, %c0_24, %c0_25], %42 {strides = array<i32>} : memref<1x1x4x128xf32, #tpu.memory_space<vmem>>, vector<1x1x1x128xf32>,
    %c0_26 = arith.constant 0 : index
    %c0_27 = arith.constant 0 : index
    %c0_28 = arith.constant 0 : index
    %c0_29 = arith.constant 0 : index
    %43 = vector.load %arg6[%c0_26, %c0_27, %c0_28, %c0_29] : memref<1x1x4x128xf32, #tpu.memory_space<vmem>>, vector<1x1x1x128xf32>
    %44 = vector.shape_cast %43 : vector<1x1x1x128xf32> to vector<1x128xf32>
    %cst_30 = arith.constant dense<0.000000e+00> : vector<128xf32>
    %45 = vector.multi_reduction <add>, %29, %cst_30 [0] : vector<2x128xf32> to vector<128xf32>
    %46 = vector.shape_cast %45 : vector<128xf32> to vector<1x128xf32>
    %47 = arith.addf %44, %46 : vector<1x128xf32>
    %c0_31 = arith.constant 0 : index
    %c0_32 = arith.constant 0 : index
    %c0_33 = arith.constant 0 : index
    %c0_34 = arith.constant 0 : index
    %48 = vector.load %arg6[%c0_31, %c0_32, %c0_33, %c0_34] : memref<1x1x4x128xf32, #tpu.memory_space<vmem>>, vector<1x1x1x128xf32>
    %49 = vector.shape_cast %48 : vector<1x1x1x128xf32> to vector<1x128xf32>
    %50 = vector.shape_cast %47 : vector<1x128xf32> to vector<1x1x1x128xf32>
    tpu.vector_store %arg6[%c0_31, %c0_32, %c0_33, %c0_34], %50 {strides = array<i32>} : memref<1x1x4x128xf32, #tpu.memory_space<vmem>>, vector<1x1x1x128xf32>,
    %c0_35 = arith.constant 0 : index
    %c0_36 = arith.constant 0 : index
    %c0_37 = arith.constant 0 : index
    %c0_38 = arith.constant 0 : index
    %51 = vector.load %arg7[%c0_35, %c0_36, %c0_37, %c0_38] : memref<1x1x4x128xf32, #tpu.memory_space<vmem>>, vector<1x1x1x128xf32>
    %52 = vector.shape_cast %51 : vector<1x1x1x128xf32> to vector<1x128xf32>
    %cst_39 = arith.constant dense<0.000000e+00> : vector<128xf32>
    %53 = vector.multi_reduction <add>, %33, %cst_39 [0] : vector<2x128xf32> to vector<128xf32>
    %54 = vector.shape_cast %53 : vector<128xf32> to vector<1x128xf32>
    %55 = arith.addf %52, %54 : vector<1x128xf32>
    %c0_40 = arith.constant 0 : index
    %c0_41 = arith.constant 0 : index
    %c0_42 = arith.constant 0 : index
    %c0_43 = arith.constant 0 : index
    %56 = vector.load %arg7[%c0_40, %c0_41, %c0_42, %c0_43] : memref<1x1x4x128xf32, #tpu.memory_space<vmem>>, vector<1x1x1x128xf32>
    %57 = vector.shape_cast %56 : vector<1x1x1x128xf32> to vector<1x128xf32>
    %58 = vector.shape_cast %55 : vector<1x128xf32> to vector<1x1x1x128xf32>
    tpu.vector_store %arg7[%c0_40, %c0_41, %c0_42, %c0_43], %58 {strides = array<i32>} : memref<1x1x4x128xf32, #tpu.memory_space<vmem>>, vector<1x1x1x128xf32>,
    %59 = arith.mulf %19, %28 : vector<2x128xf32>
    %c1_i32 = arith.constant 1 : i32
    %60 = vector.broadcast %c1_i32 : i32 to vector<2x128xi32>
    %61 = arith.cmpi eq, %4, %60 : vector<2x128xi32>
    %62 = arith.extui %61 : vector<2x128xi1> to vector<2x128xi32>
    %63 = arith.sitofp %62 : vector<2x128xi32> to vector<2x128xf32>
    %c0_44 = arith.constant 0 : index
    %c0_45 = arith.constant 0 : index
    %c1_46 = arith.constant 1 : index
    %c0_47 = arith.constant 0 : index
    %64 = vector.load %arg5[%c0_44, %c0_45, %c1_46, %c0_47] : memref<1x1x4x128xf32, #tpu.memory_space<vmem>>, vector<1x1x1x128xf32>
    %65 = vector.shape_cast %64 : vector<1x1x1x128xf32> to vector<1x128xf32>
    %66 = arith.mulf %59, %63 : vector<2x128xf32>
    %cst_48 = arith.constant dense<0.000000e+00> : vector<128xf32>
    %67 = vector.multi_reduction <add>, %66, %cst_48 [0] : vector<2x128xf32> to vector<128xf32>
    %68 = vector.shape_cast %67 : vector<128xf32> to vector<1x128xf32>
    %69 = arith.addf %65, %68 : vector<1x128xf32>
    %c0_49 = arith.constant 0 : index
    %c0_50 = arith.constant 0 : index
    %c1_51 = arith.constant 1 : index
    %c0_52 = arith.constant 0 : index
    %70 = vector.load %arg5[%c0_49, %c0_50, %c1_51, %c0_52] : memref<1x1x4x128xf32, #tpu.memory_space<vmem>>, vector<1x1x1x128xf32>
    %71 = vector.shape_cast %70 : vector<1x1x1x128xf32> to vector<1x128xf32>
    %72 = vector.shape_cast %69 : vector<1x128xf32> to vector<1x1x1x128xf32>
    tpu.vector_store %arg5[%c0_49, %c0_50, %c1_51, %c0_52], %72 {strides = array<i32>} : memref<1x1x4x128xf32, #tpu.memory_space<vmem>>, vector<1x1x1x128xf32>,
    %c0_53 = arith.constant 0 : index
    %c0_54 = arith.constant 0 : index
    %c1_55 = arith.constant 1 : index
    %c0_56 = arith.constant 0 : index
    %73 = vector.load %arg6[%c0_53, %c0_54, %c1_55, %c0_56] : memref<1x1x4x128xf32, #tpu.memory_space<vmem>>, vector<1x1x1x128xf32>
    %74 = vector.shape_cast %73 : vector<1x1x1x128xf32> to vector<1x128xf32>
    %cst_57 = arith.constant dense<0.000000e+00> : vector<128xf32>
    %75 = vector.multi_reduction <add>, %59, %cst_57 [0] : vector<2x128xf32> to vector<128xf32>
    %76 = vector.shape_cast %75 : vector<128xf32> to vector<1x128xf32>
    %77 = arith.addf %74, %76 : vector<1x128xf32>
    %c0_58 = arith.constant 0 : index
    %c0_59 = arith.constant 0 : index
    %c1_60 = arith.constant 1 : index
    %c0_61 = arith.constant 0 : index
    %78 = vector.load %arg6[%c0_58, %c0_59, %c1_60, %c0_61] : memref<1x1x4x128xf32, #tpu.memory_space<vmem>>, vector<1x1x1x128xf32>
    %79 = vector.shape_cast %78 : vector<1x1x1x128xf32> to vector<1x128xf32>
    %80 = vector.shape_cast %77 : vector<1x128xf32> to vector<1x1x1x128xf32>
    tpu.vector_store %arg6[%c0_58, %c0_59, %c1_60, %c0_61], %80 {strides = array<i32>} : memref<1x1x4x128xf32, #tpu.memory_space<vmem>>, vector<1x1x1x128xf32>,
    %c0_62 = arith.constant 0 : index
    %c0_63 = arith.constant 0 : index
    %c1_64 = arith.constant 1 : index
    %c0_65 = arith.constant 0 : index
    %81 = vector.load %arg7[%c0_62, %c0_63, %c1_64, %c0_65] : memref<1x1x4x128xf32, #tpu.memory_space<vmem>>, vector<1x1x1x128xf32>
    %82 = vector.shape_cast %81 : vector<1x1x1x128xf32> to vector<1x128xf32>
    %cst_66 = arith.constant dense<0.000000e+00> : vector<128xf32>
    %83 = vector.multi_reduction <add>, %63, %cst_66 [0] : vector<2x128xf32> to vector<128xf32>
    %84 = vector.shape_cast %83 : vector<128xf32> to vector<1x128xf32>
    %85 = arith.addf %82, %84 : vector<1x128xf32>
    %c0_67 = arith.constant 0 : index
    %c0_68 = arith.constant 0 : index
    %c1_69 = arith.constant 1 : index
    %c0_70 = arith.constant 0 : index
    %86 = vector.load %arg7[%c0_67, %c0_68, %c1_69, %c0_70] : memref<1x1x4x128xf32, #tpu.memory_space<vmem>>, vector<1x1x1x128xf32>
    %87 = vector.shape_cast %86 : vector<1x1x1x128xf32> to vector<1x128xf32>
    %88 = vector.shape_cast %85 : vector<1x128xf32> to vector<1x1x1x128xf32>
    tpu.vector_store %arg7[%c0_67, %c0_68, %c1_69, %c0_70], %88 {strides = array<i32>} : memref<1x1x4x128xf32, #tpu.memory_space<vmem>>, vector<1x1x1x128xf32>,
    %89 = arith.mulf %21, %28 : vector<2x128xf32>
    %c2_i32 = arith.constant 2 : i32
    %90 = vector.broadcast %c2_i32 : i32 to vector<2x128xi32>
    %91 = arith.cmpi eq, %4, %90 : vector<2x128xi32>
    %92 = arith.extui %91 : vector<2x128xi1> to vector<2x128xi32>
    %93 = arith.sitofp %92 : vector<2x128xi32> to vector<2x128xf32>
    %c0_71 = arith.constant 0 : index
    %c0_72 = arith.constant 0 : index
    %c2_73 = arith.constant 2 : index
    %c0_74 = arith.constant 0 : index
    %94 = vector.load %arg5[%c0_71, %c0_72, %c2_73, %c0_74] : memref<1x1x4x128xf32, #tpu.memory_space<vmem>>, vector<1x1x1x128xf32>
    %95 = vector.shape_cast %94 : vector<1x1x1x128xf32> to vector<1x128xf32>
    %96 = arith.mulf %89, %93 : vector<2x128xf32>
    %cst_75 = arith.constant dense<0.000000e+00> : vector<128xf32>
    %97 = vector.multi_reduction <add>, %96, %cst_75 [0] : vector<2x128xf32> to vector<128xf32>
    %98 = vector.shape_cast %97 : vector<128xf32> to vector<1x128xf32>
    %99 = arith.addf %95, %98 : vector<1x128xf32>
    %c0_76 = arith.constant 0 : index
    %c0_77 = arith.constant 0 : index
    %c2_78 = arith.constant 2 : index
    %c0_79 = arith.constant 0 : index
    %100 = vector.load %arg5[%c0_76, %c0_77, %c2_78, %c0_79] : memref<1x1x4x128xf32, #tpu.memory_space<vmem>>, vector<1x1x1x128xf32>
    %101 = vector.shape_cast %100 : vector<1x1x1x128xf32> to vector<1x128xf32>
    %102 = vector.shape_cast %99 : vector<1x128xf32> to vector<1x1x1x128xf32>
    tpu.vector_store %arg5[%c0_76, %c0_77, %c2_78, %c0_79], %102 {strides = array<i32>} : memref<1x1x4x128xf32, #tpu.memory_space<vmem>>, vector<1x1x1x128xf32>,
    %c0_80 = arith.constant 0 : index
    %c0_81 = arith.constant 0 : index
    %c2_82 = arith.constant 2 : index
    %c0_83 = arith.constant 0 : index
    %103 = vector.load %arg6[%c0_80, %c0_81, %c2_82, %c0_83] : memref<1x1x4x128xf32, #tpu.memory_space<vmem>>, vector<1x1x1x128xf32>
    %104 = vector.shape_cast %103 : vector<1x1x1x128xf32> to vector<1x128xf32>
    %cst_84 = arith.constant dense<0.000000e+00> : vector<128xf32>
    %105 = vector.multi_reduction <add>, %89, %cst_84 [0] : vector<2x128xf32> to vector<128xf32>
    %106 = vector.shape_cast %105 : vector<128xf32> to vector<1x128xf32>
    %107 = arith.addf %104, %106 : vector<1x128xf32>
    %c0_85 = arith.constant 0 : index
    %c0_86 = arith.constant 0 : index
    %c2_87 = arith.constant 2 : index
    %c0_88 = arith.constant 0 : index
    %108 = vector.load %arg6[%c0_85, %c0_86, %c2_87, %c0_88] : memref<1x1x4x128xf32, #tpu.memory_space<vmem>>, vector<1x1x1x128xf32>
    %109 = vector.shape_cast %108 : vector<1x1x1x128xf32> to vector<1x128xf32>
    %110 = vector.shape_cast %107 : vector<1x128xf32> to vector<1x1x1x128xf32>
    tpu.vector_store %arg6[%c0_85, %c0_86, %c2_87, %c0_88], %110 {strides = array<i32>} : memref<1x1x4x128xf32, #tpu.memory_space<vmem>>, vector<1x1x1x128xf32>,
    %c0_89 = arith.constant 0 : index
    %c0_90 = arith.constant 0 : index
    %c2_91 = arith.constant 2 : index
    %c0_92 = arith.constant 0 : index
    %111 = vector.load %arg7[%c0_89, %c0_90, %c2_91, %c0_92] : memref<1x1x4x128xf32, #tpu.memory_space<vmem>>, vector<1x1x1x128xf32>
    %112 = vector.shape_cast %111 : vector<1x1x1x128xf32> to vector<1x128xf32>
    %cst_93 = arith.constant dense<0.000000e+00> : vector<128xf32>
    %113 = vector.multi_reduction <add>, %93, %cst_93 [0] : vector<2x128xf32> to vector<128xf32>
    %114 = vector.shape_cast %113 : vector<128xf32> to vector<1x128xf32>
    %115 = arith.addf %112, %114 : vector<1x128xf32>
    %c0_94 = arith.constant 0 : index
    %c0_95 = arith.constant 0 : index
    %c2_96 = arith.constant 2 : index
    %c0_97 = arith.constant 0 : index
    %116 = vector.load %arg7[%c0_94, %c0_95, %c2_96, %c0_97] : memref<1x1x4x128xf32, #tpu.memory_space<vmem>>, vector<1x1x1x128xf32>
    %117 = vector.shape_cast %116 : vector<1x1x1x128xf32> to vector<1x128xf32>
    %118 = vector.shape_cast %115 : vector<1x128xf32> to vector<1x1x1x128xf32>
    tpu.vector_store %arg7[%c0_94, %c0_95, %c2_96, %c0_97], %118 {strides = array<i32>} : memref<1x1x4x128xf32, #tpu.memory_space<vmem>>, vector<1x1x1x128xf32>,
    %119 = arith.mulf %23, %28 : vector<2x128xf32>
    %c3_i32 = arith.constant 3 : i32
    %120 = vector.broadcast %c3_i32 : i32 to vector<2x128xi32>
    %121 = arith.cmpi eq, %4, %120 : vector<2x128xi32>
    %122 = arith.extui %121 : vector<2x128xi1> to vector<2x128xi32>
    %123 = arith.sitofp %122 : vector<2x128xi32> to vector<2x128xf32>
    %c0_98 = arith.constant 0 : index
    %c0_99 = arith.constant 0 : index
    %c3_100 = arith.constant 3 : index
    %c0_101 = arith.constant 0 : index
    %124 = vector.load %arg5[%c0_98, %c0_99, %c3_100, %c0_101] : memref<1x1x4x128xf32, #tpu.memory_space<vmem>>, vector<1x1x1x128xf32>
    %125 = vector.shape_cast %124 : vector<1x1x1x128xf32> to vector<1x128xf32>
    %126 = arith.mulf %119, %123 : vector<2x128xf32>
    %cst_102 = arith.constant dense<0.000000e+00> : vector<128xf32>
    %127 = vector.multi_reduction <add>, %126, %cst_102 [0] : vector<2x128xf32> to vector<128xf32>
    %128 = vector.shape_cast %127 : vector<128xf32> to vector<1x128xf32>
    %129 = arith.addf %125, %128 : vector<1x128xf32>
    %c0_103 = arith.constant 0 : index
    %c0_104 = arith.constant 0 : index
    %c3_105 = arith.constant 3 : index
    %c0_106 = arith.constant 0 : index
    %130 = vector.load %arg5[%c0_103, %c0_104, %c3_105, %c0_106] : memref<1x1x4x128xf32, #tpu.memory_space<vmem>>, vector<1x1x1x128xf32>
    %131 = vector.shape_cast %130 : vector<1x1x1x128xf32> to vector<1x128xf32>
    %132 = vector.shape_cast %129 : vector<1x128xf32> to vector<1x1x1x128xf32>
    tpu.vector_store %arg5[%c0_103, %c0_104, %c3_105, %c0_106], %132 {strides = array<i32>} : memref<1x1x4x128xf32, #tpu.memory_space<vmem>>, vector<1x1x1x128xf32>,
    %c0_107 = arith.constant 0 : index
    %c0_108 = arith.constant 0 : index
    %c3_109 = arith.constant 3 : index
    %c0_110 = arith.constant 0 : index
    %133 = vector.load %arg6[%c0_107, %c0_108, %c3_109, %c0_110] : memref<1x1x4x128xf32, #tpu.memory_space<vmem>>, vector<1x1x1x128xf32>
    %134 = vector.shape_cast %133 : vector<1x1x1x128xf32> to vector<1x128xf32>
    %cst_111 = arith.constant dense<0.000000e+00> : vector<128xf32>
    %135 = vector.multi_reduction <add>, %119, %cst_111 [0] : vector<2x128xf32> to vector<128xf32>
    %136 = vector.shape_cast %135 : vector<128xf32> to vector<1x128xf32>
    %137 = arith.addf %134, %136 : vector<1x128xf32>
    %c0_112 = arith.constant 0 : index
    %c0_113 = arith.constant 0 : index
    %c3_114 = arith.constant 3 : index
    %c0_115 = arith.constant 0 : index
    %138 = vector.load %arg6[%c0_112, %c0_113, %c3_114, %c0_115] : memref<1x1x4x128xf32, #tpu.memory_space<vmem>>, vector<1x1x1x128xf32>
    %139 = vector.shape_cast %138 : vector<1x1x1x128xf32> to vector<1x128xf32>
    %140 = vector.shape_cast %137 : vector<1x128xf32> to vector<1x1x1x128xf32>
    tpu.vector_store %arg6[%c0_112, %c0_113, %c3_114, %c0_115], %140 {strides = array<i32>} : memref<1x1x4x128xf32, #tpu.memory_space<vmem>>, vector<1x1x1x128xf32>,
    %c0_116 = arith.constant 0 : index
    %c0_117 = arith.constant 0 : index
    %c3_118 = arith.constant 3 : index
    %c0_119 = arith.constant 0 : index
    %141 = vector.load %arg7[%c0_116, %c0_117, %c3_118, %c0_119] : memref<1x1x4x128xf32, #tpu.memory_space<vmem>>, vector<1x1x1x128xf32>
    %142 = vector.shape_cast %141 : vector<1x1x1x128xf32> to vector<1x128xf32>
    %cst_120 = arith.constant dense<0.000000e+00> : vector<128xf32>
    %143 = vector.multi_reduction <add>, %123, %cst_120 [0] : vector<2x128xf32> to vector<128xf32>
    %144 = vector.shape_cast %143 : vector<128xf32> to vector<1x128xf32>
    %145 = arith.addf %142, %144 : vector<1x128xf32>
    %c0_121 = arith.constant 0 : index
    %c0_122 = arith.constant 0 : index
    %c3_123 = arith.constant 3 : index
    %c0_124 = arith.constant 0 : index
    %146 = vector.load %arg7[%c0_121, %c0_122, %c3_123, %c0_124] : memref<1x1x4x128xf32, #tpu.memory_space<vmem>>, vector<1x1x1x128xf32>
    %147 = vector.shape_cast %146 : vector<1x1x1x128xf32> to vector<1x128xf32>
    %148 = vector.shape_cast %145 : vector<1x128xf32> to vector<1x1x1x128xf32>
    tpu.vector_store %arg7[%c0_121, %c0_122, %c3_123, %c0_124], %148 {strides = array<i32>} : memref<1x1x4x128xf32, #tpu.memory_space<vmem>>, vector<1x1x1x128xf32>,
    return
  }
  func.func @transform_0(%arg0: i32, %arg1: i32, %arg2: i32) -> (i32, i32, i32, i32) {
    %c1_i32 = arith.constant 1 : i32
    %0 = arith.muli %arg1, %c1_i32 : i32
    %1 = arith.addi %0, %arg2 : i32
    %c0_i32 = arith.constant 0 : i32
    %c0_i32_0 = arith.constant 0 : i32
    %c0_i32_1 = arith.constant 0 : i32
    return %arg0, %c0_i32, %1, %c0_i32_0 : i32, i32, i32, i32
  }
  func.func @transform_1(%arg0: i32, %arg1: i32, %arg2: i32) -> (i32, i32, i32) {
    %c1_i32 = arith.constant 1 : i32
    %0 = arith.muli %arg1, %c1_i32 : i32
    %1 = arith.addi %0, %arg2 : i32
    %c0_i32 = arith.constant 0 : i32
    %c0_i32_0 = arith.constant 0 : i32
    return %arg0, %1, %c0_i32 : i32, i32, i32
  }
  func.func @transform_2(%arg0: i32, %arg1: i32, %arg2: i32) -> (i32, i32, i32, i32) {
    %c0_i32 = arith.constant 0 : i32
    %c0_i32_0 = arith.constant 0 : i32
    %c0_i32_1 = arith.constant 0 : i32
    return %arg0, %arg1, %c0_i32, %c0_i32_0 : i32, i32, i32, i32
  }
  func.func @transform_3(%arg0: i32, %arg1: i32, %arg2: i32) -> (i32, i32, i32, i32) {
    %c0_i32 = arith.constant 0 : i32
    %c0_i32_0 = arith.constant 0 : i32
    %c0_i32_1 = arith.constant 0 : i32
    return %arg0, %arg1, %c0_i32, %c0_i32_0 : i32, i32, i32, i32
  }
  func.func @transform_4(%arg0: i32, %arg1: i32, %arg2: i32) -> (i32, i32, i32, i32) {
    %c0_i32 = arith.constant 0 : i32
    %c0_i32_0 = arith.constant 0 : i32
    %c0_i32_1 = arith.constant 0 : i32
    return %arg0, %arg1, %c0_i32, %c0_i32_0 : i32, i32, i32, i32
  }
}

</mosaic_0001>

<llo_original>
// kernel: tpu_custom_call.1
$region0: #{tpu_custom_call.1}
  #allocation0 [shape = 'u32[]', space=smem, size = 0x4, offset = 0x4, fixed_abs, tag = 'smem constant byte address 0x4 - core index']
  #allocation1 [shape = 'u32[144,128]{1,0:T(1,128)}', space=vmem, size = 0x12000, scoped, tag = 'internal scratch']
  %s0 = inlined_call_operand.hbm [shape: f32[2,4,2,128], index: 0, kind: input, shape index: {}]
  %s1 = inlined_call_operand.hbm [shape: s32[2,2,128], index: 1, kind: input, shape index: {}]
  %s2 = inlined_call_operand.hbm [shape: f32[2,1,4,128], index: 2, kind: output, shape index: {0}]
  %s3 = inlined_call_operand.hbm [shape: f32[2,1,4,128], index: 3, kind: output, shape index: {1}]
  %s4 = inlined_call_operand.hbm [shape: f32[2,1,4,128], index: 4, kind: output, shape index: {2}]
  %5 = xla_tuple %s2, %s3, %s4
  %s6 = sld [smem:[#allocation0]]
  $region69: #{tpu_custom_call.1} parent=0
    _
  %s8 = ssub.s32 1, %s6
  %s9 = scalar_select 0, %s8, %s6
  $region1: #{tpu_custom_call.1} parent=0
    #allocation2 [shape = 'u8[8192]{0}', space=vmem, size = 0x2000, scoped, tag = 'input window, operand 0']
    #allocation3 [shape = 's32[2]{0}', space=sflag, size = 0x8, scoped, tag = 'scoped memory for tpu_custom_call.1']
    #allocation4 [shape = 's32[2]{0}', space=sflag, size = 0x8, scoped, tag = 'scoped memory for tpu_custom_call.1']
    #allocation5 [shape = 'u8[2048]{0}', space=vmem, size = 0x800, scoped, tag = 'input window, operand 1']
    #allocation6 [shape = 's32[2]{0}', space=sflag, size = 0x8, scoped, tag = 'scoped memory for tpu_custom_call.1']
    #allocation7 [shape = 'u8[4096]{0}', space=vmem, size = 0x1000, scoped, tag = 'output window, operand 0']
    #allocation8 [shape = 'u8[4096]{0}', space=vmem, size = 0x1000, scoped, tag = 'output window, operand 1']
    #allocation9 [shape = 's32[2]{0}', space=sflag, size = 0x8, scoped, tag = 'scoped memory for tpu_custom_call.1']
    #allocation10 [shape = 'u8[4096]{0}', space=vmem, size = 0x1000, scoped, tag = 'output window, operand 2']
    %10 = vsyncpa [#allocation3], 0
    %s11 = scalar_lea.sflag [#allocation3], 1
    %12 = vsyncpa %s11, 0
    %13 = vsyncpa [#allocation6], 0
    %s14 = scalar_lea.sflag [#allocation6], 1
    %15 = vsyncpa %s14, 0
    %16 = vsyncpa [#allocation4], 0
    %s17 = scalar_lea.sflag [#allocation4], 1
    %18 = vsyncpa %s17, 0
    %19 = vsyncpa [#allocation9], 0
    %s20 = scalar_lea.sflag [#allocation9], 1
    %21 = vsyncpa %s20, 0
    loop: start=0, step=1, limit=4
    $region2: #{tpu_custom_call.1} parent=1 // loop_pre_header
      _
    $region3: #{tpu_custom_call.1} parent=1 // loop_header
      %s23 = sphi 0, %s27
      %p24 = scmp.ge.s32.totalorder %s23, 4
      %s30 = sphi 0, %s49
      %s31 = sphi 0, %s45
      %s32 = sphi 0, %s41
      %s33 = sphi 0, %s30
      %s34 = sphi 0, %s31
      %s35 = sphi 0, %s32
      %s36 = sphi 0, %s33
      %s37 = sphi 0, %s34
      %s38 = sphi 0, %s35
      %s56 = sphi 0, %s58
      %s59 = sphi 0, %s56
      %s60 = sphi 0, %s59
      %s76 = sphi 0, %s60
      %s86 = sphi 0, %s88
      %s89 = sphi 0, %s86
      %s90 = sphi 0, %s89
      %s106 = sphi 0, %s90
      %s114 = sphi 0, %s116
      %s117 = sphi 0, %s114
      %s118 = sphi 0, %s117
      %s134 = sphi 0, %s118
      %s142 = sphi 0, %s144
      %s145 = sphi 0, %s142
      %s146 = sphi 0, %s145
      %s162 = sphi 0, %s146
      %s170 = sphi 0, %s172
      %s173 = sphi 0, %s170
      %s174 = sphi 0, %s173
      %s190 = sphi 0, %s174
    $region4: #{tpu_custom_call.1} parent=1 // loop_header_branch
      %26 = sbr.rel (%p24) target = $region8
    $region5: #{tpu_custom_call.1} parent=1 // loop_body
      %s28 = ssub.s32 %s23, 1
      %s29 = ssub.s32 %s23, 2
      %s39 = sadd.s32 1, %s32
      %p40 = scmp.ge.s32.totalorder %s39, 1
      %s41 = scalar_select %p40, 0, %s39
      %s42 = sadd.s32 1, %s31
      %s43 = scalar_select %p40, %s42, %s31
      %p44 = scmp.ge.s32.totalorder %s43, 1
      %s45 = scalar_select %p44, 0, %s43
      %s46 = sadd.s32 1, %s30
      %s47 = scalar_select %p44, %s46, %s30
      %p48 = scmp.ge.s32.totalorder %s47, 2
      %s49 = scalar_select %p48, 0, %s47
      %s50 = sadd.s32 %s31, %s32
      %s51 = sadd.s32 %s45, %s41
      %s52 = ssub.s32 %s30, %s49
      %s53 = ssub.s32 %s50, %s51
      %s54 = sor.u32 %s52, %s53
      %p55 = scmp.eq.s32.totalorder %s54, 0
      %s57 = sadd.s32 %s56, 1
      %s58 = scalar_select %p55, %s56, %s57
      %p61 = pneg %p55
      %p62 = scmp.eq.s32.totalorder %s23, 1
      %p63 = por %p61, %p62
      %p64 = scmp.ne.s32.totalorder %s56, %s59
      %p65 = scmp.eq.s32.totalorder %s23, 0
      %p66 = por %p64, %p65
      %p67 = scmp.ne.s32.totalorder %s56, %s59
      %p68 = scmp.eq.s32.totalorder %s28, 1
      %p69 = por %p67, %p68
      %p70 = scmp.ne.s32.totalorder %s59, %s60
      %p71 = scmp.eq.s32.totalorder %s28, 0
      %p72 = por %p70, %p71
      %p73 = scmp.ne.s32.totalorder %s59, %s60
      %p74 = scmp.eq.s32.totalorder %s29, 1
      %p75 = por %p73, %p74
      %p77 = scmp.ne.s32.totalorder %s60, %s76
      %p78 = scmp.eq.s32.totalorder %s29, 0
      %p79 = por %p77, %p78
      %s80 = sadd.s32 %s31, %s32
      %s81 = sadd.s32 %s45, %s41
      %s82 = ssub.s32 %s30, %s49
      %s83 = ssub.s32 %s80, %s81
      %s84 = sor.u32 %s82, %s83
      %p85 = scmp.eq.s32.totalorder %s84, 0
      %s87 = sadd.s32 %s86, 1
      %s88 = scalar_select %p85, %s86, %s87
      %p91 = pneg %p85
      %p92 = scmp.eq.s32.totalorder %s23, 1
      %p93 = por %p91, %p92
      %p94 = scmp.ne.s32.totalorder %s86, %s89
      %p95 = scmp.eq.s32.totalorder %s23, 0
      %p96 = por %p94, %p95
      %p97 = scmp.ne.s32.totalorder %s86, %s89
      %p98 = scmp.eq.s32.totalorder %s28, 1
      %p99 = por %p97, %p98
      %p100 = scmp.ne.s32.totalorder %s89, %s90
      %p101 = scmp.eq.s32.totalorder %s28, 0
      %p102 = por %p100, %p101
      %p103 = scmp.ne.s32.totalorder %s89, %s90
      %p104 = scmp.eq.s32.totalorder %s29, 1
      %p105 = por %p103, %p104
      %p107 = scmp.ne.s32.totalorder %s90, %s106
      %p108 = scmp.eq.s32.totalorder %s29, 0
      %p109 = por %p107, %p108
      %s110 = ssub.s32 %s30, %s49
      %s111 = ssub.s32 %s31, %s45
      %s112 = sor.u32 %s110, %s111
      %p113 = scmp.eq.s32.totalorder %s112, 0
      %s115 = sadd.s32 %s114, 1
      %s116 = scalar_select %p113, %s114, %s115
      %p119 = pneg %p113
      %p120 = scmp.eq.s32.totalorder %s23, 1
      %p121 = por %p119, %p120
      %p122 = scmp.ne.s32.totalorder %s114, %s117
      %p123 = scmp.eq.s32.totalorder %s23, 0
      %p124 = por %p122, %p123
      %p125 = scmp.ne.s32.totalorder %s114, %s117
      %p126 = scmp.eq.s32.totalorder %s28, 1
      %p127 = por %p125, %p126
      %p128 = scmp.ne.s32.totalorder %s117, %s118
      %p129 = scmp.eq.s32.totalorder %s28, 0
      %p130 = por %p128, %p129
      %p131 = scmp.ne.s32.totalorder %s117, %s118
      %p132 = scmp.eq.s32.totalorder %s29, 1
      %p133 = por %p131, %p132
      %p135 = scmp.ne.s32.totalorder %s118, %s134
      %p136 = scmp.eq.s32.totalorder %s29, 0
      %p137 = por %p135, %p136
      %s138 = ssub.s32 %s30, %s49
      %s139 = ssub.s32 %s31, %s45
      %s140 = sor.u32 %s138, %s139
      %p141 = scmp.eq.s32.totalorder %s140, 0
      %s143 = sadd.s32 %s142, 1
      %s144 = scalar_select %p141, %s142, %s143
      %p147 = pneg %p141
      %p148 = scmp.eq.s32.totalorder %s23, 1
      %p149 = por %p147, %p148
      %p150 = scmp.ne.s32.totalorder %s142, %s145
      %p151 = scmp.eq.s32.totalorder %s23, 0
      %p152 = por %p150, %p151
      %p153 = scmp.ne.s32.totalorder %s142, %s145
      %p154 = scmp.eq.s32.totalorder %s28, 1
      %p155 = por %p153, %p154
      %p156 = scmp.ne.s32.totalorder %s145, %s146
      %p157 = scmp.eq.s32.totalorder %s28, 0
      %p158 = por %p156, %p157
      %p159 = scmp.ne.s32.totalorder %s145, %s146
      %p160 = scmp.eq.s32.totalorder %s29, 1
      %p161 = por %p159, %p160
      %p163 = scmp.ne.s32.totalorder %s146, %s162
      %p164 = scmp.eq.s32.totalorder %s29, 0
      %p165 = por %p163, %p164
      %s166 = ssub.s32 %s30, %s49
      %s167 = ssub.s32 %s31, %s45
      %s168 = sor.u32 %s166, %s167
      %p169 = scmp.eq.s32.totalorder %s168, 0
      %s171 = sadd.s32 %s170, 1
      %s172 = scalar_select %p169, %s170, %s171
      %p175 = pneg %p169
      %p176 = scmp.eq.s32.totalorder %s23, 1
      %p177 = por %p175, %p176
      %p178 = scmp.ne.s32.totalorder %s170, %s173
      %p179 = scmp.eq.s32.totalorder %s23, 0
      %p180 = por %p178, %p179
      %p181 = scmp.ne.s32.totalorder %s170, %s173
      %p182 = scmp.eq.s32.totalorder %s28, 1
      %p183 = por %p181, %p182
      %p184 = scmp.ne.s32.totalorder %s173, %s174
      %p185 = scmp.eq.s32.totalorder %s28, 0
      %p186 = por %p184, %p185
      %p187 = scmp.ne.s32.totalorder %s173, %s174
      %p188 = scmp.eq.s32.totalorder %s29, 1
      %p189 = por %p187, %p188
      %p191 = scmp.ne.s32.totalorder %s174, %s190
      %p192 = scmp.eq.s32.totalorder %s29, 0
      %p193 = por %p191, %p192
      %p194 = scmp.le.s32.totalorder 1, %s23
      %p195 = scmp.lt.s32.totalorder %s23, 3
      %p196 = pnand %p194, %p195
      %p197 = pneg %p196
      // Predicated region
      $region9: #{tpu_custom_call.1} parent=5 // pred_check
        _
      $region10: #{tpu_custom_call.1} parent=5 // pred_check_branch
        %199 = sbr.rel (%p196) target = $region12
      $region11: #{tpu_custom_call.1} parent=5 // pred_region
        %s200 = ssub.s32 %s23, 1
      $region12: #{tpu_custom_call.1} parent=5 // pred_fallthru
        _
      %p201 = scmp.lt.s32.totalorder %s23, 2
      // Predicated region
      $region13: #{tpu_custom_call.1} parent=5 // pred_check
        %p202 = pneg %p201
      $region14: #{tpu_custom_call.1} parent=5 // pred_check_branch
        %204 = sbr.rel (%p202) target = $region16
      $region15: #{tpu_custom_call.1} parent=5 // pred_region
        // Predicated region
        $region17: #{tpu_custom_call.1} parent=15 // pred_check
          %p205 = pneg %p66
        $region18: #{tpu_custom_call.1} parent=15 // pred_check_branch
          %207 = sbr.rel (%p205) target = $region20
        $region19: #{tpu_custom_call.1} parent=15 // pred_region
          %s208 = sand.u32 %s56, 1
          %s209 = scalar_lea.sflag [#allocation3], %s208
          %s210 = sand.u32 %s56, 1
          %s211 = smul.addr %s210, 8
          %s212 = scalar_lea.vmem [#allocation2], %s211
          %s213 = sadd.s32 %s31, %s32
          %s215 = ssub.s32 128, 128
          %216 = vsyncadd %s209, %s215
          %s217 = smul.addr %s30, 4
          %s218 = sadd.s32 %s213, %s217
          %s219 = smul.addr %s218, 32
          %s220 = scalar_lea.hbm %s0, %s219
          %s221 = sshll.u32 %s212, 4
          %s222 = int_to_ptr.vmem [resolvable:$true] %s221
          %227 = dma.hbm_to_vmem [thread:$0]  %s220, 128, %s222, %s209, 32, 32, 2
        $region20: #{tpu_custom_call.1} parent=15 // pred_fallthru
          _
        // Predicated region
        $region21: #{tpu_custom_call.1} parent=15 // pred_check
          %p228 = pneg %p96
        $region22: #{tpu_custom_call.1} parent=15 // pred_check_branch
          %230 = sbr.rel (%p228) target = $region24
        $region23: #{tpu_custom_call.1} parent=15 // pred_region
          %s231 = sand.u32 %s86, 1
          %s232 = scalar_lea.sflag [#allocation6], %s231
          %s233 = sand.u32 %s86, 1
          %s234 = smul.addr %s233, 2
          %s235 = scalar_lea.vmem [#allocation5], %s234
          %s236 = sadd.s32 %s31, %s32
          %s238 = ssub.s32 32, 32
          %239 = vsyncadd %s232, %s238
          %s240 = sadd.s32 %s236, %s30
          %s241 = smul.addr %s240, 32
          %s242 = scalar_lea.hbm %s1, %s241
          %s244 = sshll.u32 %s235, 4
          %s245 = int_to_ptr.vmem [resolvable:$true] %s244
          %247 = dma.hbm_to_vmem [thread:$0]  %s242, 32, %s245, %s232
        $region24: #{tpu_custom_call.1} parent=15 // pred_fallthru
          _
      $region16: #{tpu_custom_call.1} parent=5 // pred_fallthru
        _
      %p248 = scmp.le.s32.totalorder 1, %s23
      %p249 = scmp.lt.s32.totalorder %s23, 3
      %p250 = pnand %p248, %p249
      %p251 = pneg %p250
      // Predicated region
      $region25: #{tpu_custom_call.1} parent=5 // pred_check
        _
      $region26: #{tpu_custom_call.1} parent=5 // pred_check_branch
        %253 = sbr.rel (%p250) target = $region28
      $region27: #{tpu_custom_call.1} parent=5 // pred_region
        %s254 = ssub.s32 %s23, 1
        %s255 = sand.u32 %s59, 1
        %s256 = scalar_lea.sflag [#allocation3], %s255
        %s257 = sand.u32 %s59, 1
        %s258 = smul.addr %s257, 8
        %s259 = scalar_lea.vmem [#allocation2], %s258
        // Predicated region
        $region29: #{tpu_custom_call.1} parent=27 // pred_check
          %p260 = pneg %p72
        $region30: #{tpu_custom_call.1} parent=27 // pred_check_branch
          %262 = sbr.rel (%p260) target = $region32
        $region31: #{tpu_custom_call.1} parent=27 // pred_region
          %263 = dma.done %s256, 128
        $region32: #{tpu_custom_call.1} parent=27 // pred_fallthru
          _
        %s264 = sand.u32 %s89, 1
        %s265 = scalar_lea.sflag [#allocation6], %s264
        %s266 = sand.u32 %s89, 1
        %s267 = smul.addr %s266, 2
        %s268 = scalar_lea.vmem [#allocation5], %s267
        // Predicated region
        $region33: #{tpu_custom_call.1} parent=27 // pred_check
          %p269 = pneg %p102
        $region34: #{tpu_custom_call.1} parent=27 // pred_check_branch
          %271 = sbr.rel (%p269) target = $region36
        $region35: #{tpu_custom_call.1} parent=27 // pred_region
          %272 = dma.done %s265, 32
        $region36: #{tpu_custom_call.1} parent=27 // pred_fallthru
          _
        %s273 = sand.u32 %s59, 1
        %s274 = scalar_lea.sflag [#allocation3], %s273
        %s275 = sand.u32 %s59, 1
        %s276 = smul.addr %s275, 8
        %s277 = scalar_lea.vmem [#allocation2], %s276
        %p278 = pneg %p72
        %p279 = pneg %p69
        %s280 = sand.u32 %s89, 1
        %s281 = scalar_lea.sflag [#allocation6], %s280
        %s282 = sand.u32 %s89, 1
        %s283 = smul.addr %s282, 2
        %s284 = scalar_lea.vmem [#allocation5], %s283
        %p285 = pneg %p102
        %p286 = pneg %p99
        %p287 = pneg %p130
        %p288 = pneg %p127
        %s289 = sand.u32 %s117, 1
        %s290 = scalar_lea.sflag [#allocation4], %s289
        %s291 = sand.u32 %s117, 1
        %s292 = smul.addr %s291, 4
        %s293 = scalar_lea.vmem [#allocation7], %s292
        %p294 = pneg %p158
        %p295 = pneg %p155
        %s296 = sand.u32 %s28, 1
        %s297 = scalar_lea.sflag [#allocation9], %s296
        %s298 = sand.u32 %s145, 1
        %s299 = smul.addr %s298, 4
        %s300 = scalar_lea.vmem [#allocation8], %s299
        %p301 = pneg %p186
        %p302 = pneg %p183
        %s303 = sand.u32 %s28, 1
        %s304 = scalar_lea.sflag [#allocation9], %s303
        %s305 = sand.u32 %s173, 1
        %s306 = smul.addr %s305, 4
        %s307 = scalar_lea.vmem [#allocation10], %s306
        %s308 = sadd.s32 %s34, %s35
        %s309 = sadd.s32 %s34, %s35
        %p310 = scmp.eq.s32.totalorder %s35, 0
        // Predicated region
        $region37: #{tpu_custom_call.1} parent=27 // pred_check
          %p311 = pneg %p310
        $region38: #{tpu_custom_call.1} parent=27 // pred_check_branch
          %313 = sbr.rel (%p311) target = $region40
        $region39: #{tpu_custom_call.1} parent=27 // pred_region
          %314 = vst [vmem:[%s293] sm:$0xf] 0.0
          %315 = vst [vmem:[%s300] sm:$0xf] 0.0
          %316 = vst [vmem:[%s307] sm:$0xf] 0.0
        $region40: #{tpu_custom_call.1} parent=27 // pred_fallthru
          _
        %v317 = vld [vmem:[%s268] sm:$0x3]
        %v318 = vld [vmem:[%s259] sm:$0x3]
        %s319 = scalar_lea.vmem %s259, 2 [#allocation2]
        %v320 = vld [vmem:[%s319] sm:$0x3]
        %s321 = scalar_lea.vmem %s259, 4 [#allocation2]
        %v322 = vld [vmem:[%s321] sm:$0x3]
        %s323 = scalar_lea.vmem %s259, 6 [#allocation2]
        %v324 = vld [vmem:[%s323] sm:$0x3]
        %v325 = vmax.f32 %v318, %v320
        %v326 = vmax.f32 %v325, %v322
        %v327 = vmax.f32 %v326, %v324
        %v328 = vsub.f32 %v318, %v327
        %v329 = vmul.f32 %v328, 1.442695
        %v330 = vpow.pop %v329
        %v331 = vsub.f32 %v320, %v327
        %v332 = vmul.f32 %v331, 1.442695
        %v333 = vpow.pop %v332
        %v334 = vsub.f32 %v322, %v327
        %v335 = vmul.f32 %v334, 1.442695
        %v336 = vpow.pop %v335
        %v337 = vsub.f32 %v324, %v327
        %v338 = vmul.f32 %v337, 1.442695
        %v339 = vpow.pop %v338
        %v340 = vadd.f32 %v330, %v333
        %v341 = vadd.f32 %v340, %v336
        %v342 = vadd.f32 %v341, %v339
        %v343 = vrcp.pop %v342
        %v344 = vmul.f32 1.0, %v343
        %v345 = vmul.f32 %v330, %v344
        %vm346 = vcmp.eq.s32.totalorder %v317, 0
        %v347 = vsel %vm346, 1, 0
        %v348 = vcvt.s32.f32 %v347
        %v349 = vld [vmem:[%s293] sm:$0x1]
        %v350 = vmul.f32 %v345, %v348
        %vm351 = vcmask 1041408
        %v352 = vsel %vm351, %v350, 0.0
        %v353 = vrot.slane %v352, 4
        %v354 = vadd.f32 %v352, %v353
        %v355 = vrot.slane %v354, 2
        %v356 = vadd.f32 %v354, %v355
        %v357 = vrot.slane %v356, 1
        %v358 = vadd.f32 %v356, %v357
        %v359 = vadd.f32 %v349, %v358
        %360 = vst [vmem:[%s293] sm:$0x1] %v359
        %v361 = vld [vmem:[%s300] sm:$0x1]
        %v362 = vsel %vm351, %v345, 0.0
        %v363 = vrot.slane %v362, 4
        %v364 = vadd.f32 %v362, %v363
        %v365 = vrot.slane %v364, 2
        %v366 = vadd.f32 %v364, %v365
        %v367 = vrot.slane %v366, 1
        %v368 = vadd.f32 %v366, %v367
        %v369 = vadd.f32 %v361, %v368
        %370 = vst [vmem:[%s300] sm:$0x1] %v369
        %v371 = vld [vmem:[%s307] sm:$0x1]
        %v372 = vsel %vm351, %v348, 0.0
        %v373 = vrot.slane %v372, 4
        %v374 = vadd.f32 %v372, %v373
        %v375 = vrot.slane %v374, 2
        %v376 = vadd.f32 %v374, %v375
        %v377 = vrot.slane %v376, 1
        %v378 = vadd.f32 %v376, %v377
        %v379 = vadd.f32 %v371, %v378
        %380 = vst [vmem:[%s307] sm:$0x1] %v379
        %v381 = vmul.f32 %v333, %v344
        %vm382 = vcmp.eq.s32.totalorder %v317, 1
        %v383 = vsel %vm382, 1, 0
        %v384 = vcvt.s32.f32 %v383
        %v385 = vld [vmem:[%s293 + $0x1] sm:$0x1]
        %v386 = vmul.f32 %v381, %v384
        %v387 = vsel %vm351, %v386, 0.0
        %v388 = vrot.slane %v387, 4
        %v389 = vadd.f32 %v387, %v388
        %v390 = vrot.slane %v389, 2
        %v391 = vadd.f32 %v389, %v390
        %v392 = vrot.slane %v391, 1
        %v393 = vadd.f32 %v391, %v392
        %v394 = vadd.f32 %v385, %v393
        %395 = vst [vmem:[%s293 + $0x1] sm:$0x1] %v394
        %v396 = vld [vmem:[%s300 + $0x1] sm:$0x1]
        %v397 = vsel %vm351, %v381, 0.0
        %v398 = vrot.slane %v397, 4
        %v399 = vadd.f32 %v397, %v398
        %v400 = vrot.slane %v399, 2
        %v401 = vadd.f32 %v399, %v400
        %v402 = vrot.slane %v401, 1
        %v403 = vadd.f32 %v401, %v402
        %v404 = vadd.f32 %v396, %v403
        %405 = vst [vmem:[%s300 + $0x1] sm:$0x1] %v404
        %v406 = vld [vmem:[%s307 + $0x1] sm:$0x1]
        %v407 = vsel %vm351, %v384, 0.0
        %v408 = vrot.slane %v407, 4
        %v409 = vadd.f32 %v407, %v408
        %v410 = vrot.slane %v409, 2
        %v411 = vadd.f32 %v409, %v410
        %v412 = vrot.slane %v411, 1
        %v413 = vadd.f32 %v411, %v412
        %v414 = vadd.f32 %v406, %v413
        %415 = vst [vmem:[%s307 + $0x1] sm:$0x1] %v414
        %v416 = vmul.f32 %v336, %v344
        %vm417 = vcmp.eq.s32.totalorder %v317, 2
        %v418 = vsel %vm417, 1, 0
        %v419 = vcvt.s32.f32 %v418
        %v420 = vld [vmem:[%s293 + $0x2] sm:$0x1]
        %v421 = vmul.f32 %v416, %v419
        %v422 = vsel %vm351, %v421, 0.0
        %v423 = vrot.slane %v422, 4
        %v424 = vadd.f32 %v422, %v423
        %v425 = vrot.slane %v424, 2
        %v426 = vadd.f32 %v424, %v425
        %v427 = vrot.slane %v426, 1
        %v428 = vadd.f32 %v426, %v427
        %v429 = vadd.f32 %v420, %v428
        %430 = vst [vmem:[%s293 + $0x2] sm:$0x1] %v429
        %v431 = vld [vmem:[%s300 + $0x2] sm:$0x1]
        %v432 = vsel %vm351, %v416, 0.0
        %v433 = vrot.slane %v432, 4
        %v434 = vadd.f32 %v432, %v433
        %v435 = vrot.slane %v434, 2
        %v436 = vadd.f32 %v434, %v435
        %v437 = vrot.slane %v436, 1
        %v438 = vadd.f32 %v436, %v437
        %v439 = vadd.f32 %v431, %v438
        %440 = vst [vmem:[%s300 + $0x2] sm:$0x1] %v439
        %v441 = vld [vmem:[%s307 + $0x2] sm:$0x1]
        %v442 = vsel %vm351, %v419, 0.0
        %v443 = vrot.slane %v442, 4
        %v444 = vadd.f32 %v442, %v443
        %v445 = vrot.slane %v444, 2
        %v446 = vadd.f32 %v444, %v445
        %v447 = vrot.slane %v446, 1
        %v448 = vadd.f32 %v446, %v447
        %v449 = vadd.f32 %v441, %v448
        %450 = vst [vmem:[%s307 + $0x2] sm:$0x1] %v449
        %v451 = vmul.f32 %v339, %v344
        %vm452 = vcmp.eq.s32.totalorder %v317, 3
        %v453 = vsel %vm452, 1, 0
        %v454 = vcvt.s32.f32 %v453
        %v455 = vld [vmem:[%s293 + $0x3] sm:$0x1]
        %v456 = vmul.f32 %v451, %v454
        %v457 = vsel %vm351, %v456, 0.0
        %v458 = vrot.slane %v457, 4
        %v459 = vadd.f32 %v457, %v458
        %v460 = vrot.slane %v459, 2
        %v461 = vadd.f32 %v459, %v460
        %v462 = vrot.slane %v461, 1
        %v463 = vadd.f32 %v461, %v462
        %v464 = vadd.f32 %v455, %v463
        %465 = vst [vmem:[%s293 + $0x3] sm:$0x1] %v464
        %v466 = vld [vmem:[%s300 + $0x3] sm:$0x1]
        %v467 = vsel %vm351, %v451, 0.0
        %v468 = vrot.slane %v467, 4
        %v469 = vadd.f32 %v467, %v468
        %v470 = vrot.slane %v469, 2
        %v471 = vadd.f32 %v469, %v470
        %v472 = vrot.slane %v471, 1
        %v473 = vadd.f32 %v471, %v472
        %v474 = vadd.f32 %v466, %v473
        %475 = vst [vmem:[%s300 + $0x3] sm:$0x1] %v474
        %v476 = vld [vmem:[%s307 + $0x3] sm:$0x1]
        %v477 = vsel %vm351, %v454, 0.0
        %v478 = vrot.slane %v477, 4
        %v479 = vadd.f32 %v477, %v478
        %v480 = vrot.slane %v479, 2
        %v481 = vadd.f32 %v479, %v480
        %v482 = vrot.slane %v481, 1
        %v483 = vadd.f32 %v481, %v482
        %v484 = vadd.f32 %v476, %v483
        %485 = vst [vmem:[%s307 + $0x3] sm:$0x1] %v484
        %s486 = sand.u32 %s117, 1
        %s487 = scalar_lea.sflag [#allocation4], %s486
        %s488 = sand.u32 %s117, 1
        %s489 = smul.addr %s488, 4
        %s490 = scalar_lea.vmem [#allocation7], %s489
        %s491 = sand.u32 %s28, 1
        %s492 = scalar_lea.sflag [#allocation9], %s491
        %s493 = sand.u32 %s145, 1
        %s494 = smul.addr %s493, 4
        %s495 = scalar_lea.vmem [#allocation8], %s494
        %s496 = sand.u32 %s28, 1
        %s497 = scalar_lea.sflag [#allocation9], %s496
        %s498 = sand.u32 %s173, 1
        %s499 = smul.addr %s498, 4
        %s500 = scalar_lea.vmem [#allocation10], %s499
        // Predicated region
        $region41: #{tpu_custom_call.1} parent=27 // pred_check
          %p501 = pneg %p127
        $region42: #{tpu_custom_call.1} parent=27 // pred_check_branch
          %503 = sbr.rel (%p501) target = $region44
        $region43: #{tpu_custom_call.1} parent=27 // pred_region
          %s505 = ssub.s32 64, 64
          %506 = vsyncadd %s487, %s505
          %s507 = sadd.s32 %s34, %s33
          %s508 = smul.addr %s507, 64
          %s509 = scalar_lea.hbm %s2, %s508
          %s511 = sshll.u32 %s490, 4
          %s512 = int_to_ptr.vmem [resolvable:$true] %s511
          %514 = dma.vmem_to_hbm [thread:$0]  %s512, 64, %s509, %s487
        $region44: #{tpu_custom_call.1} parent=27 // pred_fallthru
          _
        // Predicated region
        $region45: #{tpu_custom_call.1} parent=27 // pred_check
          %p515 = pneg %p155
        $region46: #{tpu_custom_call.1} parent=27 // pred_check_branch
          %517 = sbr.rel (%p515) target = $region48
        $region47: #{tpu_custom_call.1} parent=27 // pred_region
          %s519 = ssub.s32 64, 64
          %520 = vsyncadd %s492, %s519
          %s521 = sadd.s32 %s34, %s33
          %s522 = smul.addr %s521, 64
          %s523 = scalar_lea.hbm %s3, %s522
          %s525 = sshll.u32 %s495, 4
          %s526 = int_to_ptr.vmem [resolvable:$true] %s525
          %528 = dma.vmem_to_hbm [thread:$0]  %s526, 64, %s523, %s492
        $region48: #{tpu_custom_call.1} parent=27 // pred_fallthru
          _
        // Predicated region
        $region49: #{tpu_custom_call.1} parent=27 // pred_check
          %p529 = pneg %p183
        $region50: #{tpu_custom_call.1} parent=27 // pred_check_branch
          %531 = sbr.rel (%p529) target = $region52
        $region51: #{tpu_custom_call.1} parent=27 // pred_region
          %s533 = ssub.s32 64, 64
          %534 = vsyncadd %s497, %s533
          %s535 = sadd.s32 %s34, %s33
          %s536 = smul.addr %s535, 64
          %s537 = scalar_lea.hbm %s4, %s536
          %s539 = sshll.u32 %s500, 4
          %s540 = int_to_ptr.vmem [resolvable:$true] %s539
          %542 = dma.vmem_to_hbm [thread:$0]  %s540, 64, %s537, %s497
        $region52: #{tpu_custom_call.1} parent=27 // pred_fallthru
          _
      $region28: #{tpu_custom_call.1} parent=5 // pred_fallthru
        _
      %p543 = scmp.le.s32.totalorder 2, %s23
      // Predicated region
      $region53: #{tpu_custom_call.1} parent=5 // pred_check
        %p544 = pneg %p543
      $region54: #{tpu_custom_call.1} parent=5 // pred_check_branch
        %546 = sbr.rel (%p544) target = $region56
      $region55: #{tpu_custom_call.1} parent=5 // pred_region
        %s547 = ssub.s32 %s23, 2
        // Predicated region
        $region57: #{tpu_custom_call.1} parent=55 // pred_check
          %p548 = pneg %p133
        $region58: #{tpu_custom_call.1} parent=55 // pred_check_branch
          %550 = sbr.rel (%p548) target = $region60
        $region59: #{tpu_custom_call.1} parent=55 // pred_region
          %s551 = sand.u32 %s118, 1
          %s552 = scalar_lea.sflag [#allocation4], %s551
          %s553 = sand.u32 %s118, 1
          %s554 = smul.addr %s553, 4
          %s555 = scalar_lea.vmem [#allocation7], %s554
          %556 = dma.done %s552, 64
        $region60: #{tpu_custom_call.1} parent=55 // pred_fallthru
          _
        // Predicated region
        $region61: #{tpu_custom_call.1} parent=55 // pred_check
          %p557 = pneg %p161
        $region62: #{tpu_custom_call.1} parent=55 // pred_check_branch
          %559 = sbr.rel (%p557) target = $region64
        $region63: #{tpu_custom_call.1} parent=55 // pred_region
          %s560 = sand.u32 %s29, 1
          %s561 = scalar_lea.sflag [#allocation9], %s560
          %s562 = sand.u32 %s146, 1
          %s563 = smul.addr %s562, 4
          %s564 = scalar_lea.vmem [#allocation8], %s563
          %565 = dma.done %s561, 64
        $region64: #{tpu_custom_call.1} parent=55 // pred_fallthru
          _
        // Predicated region
        $region65: #{tpu_custom_call.1} parent=55 // pred_check
          %p566 = pneg %p189
        $region66: #{tpu_custom_call.1} parent=55 // pred_check_branch
          %568 = sbr.rel (%p566) target = $region68
        $region67: #{tpu_custom_call.1} parent=55 // pred_region
          %s569 = sand.u32 %s29, 1
          %s570 = scalar_lea.sflag [#allocation9], %s569
          %s571 = sand.u32 %s174, 1
          %s572 = smul.addr %s571, 4
          %s573 = scalar_lea.vmem [#allocation10], %s572
          %574 = dma.done %s570, 64
        $region68: #{tpu_custom_call.1} parent=55 // pred_fallthru
          _
      $region56: #{tpu_custom_call.1} parent=5 // pred_fallthru
        _
    $region6: #{tpu_custom_call.1} parent=1 // loop_footer
      %s27 = sadd.s32 1, %s23
    $region7: #{tpu_custom_call.1} parent=1 // loop_footer_branch
      %22 = sbr.rel target = $region3
    $region8: #{tpu_custom_call.1} parent=1 // loop_exit
      _
    %575 = vsyncpa [#allocation3], 1
    %s576 = scalar_lea.sflag [#allocation3], 1
    %577 = vsyncpa %s576, 1
    %578 = vsyncpa [#allocation6], 1
    %s579 = scalar_lea.sflag [#allocation6], 1
    %580 = vsyncpa %s579, 1
    %581 = vsyncpa [#allocation4], 1
    %s582 = scalar_lea.sflag [#allocation4], 1
    %583 = vsyncpa %s582, 1
    %584 = vsyncpa [#allocation9], 1
    %s585 = scalar_lea.sflag [#allocation9], 1
    %586 = vsyncpa %s585, 1

</llo_original>
